<compile_context>
chip_gen: v5e
topology: v5e:2x2
jax: 0.10.0
libtpu: 0.0.40
codegen_flags: <defaults>
</compile_context>

<pallas_src>
import jax
import jax.numpy as jnp
from jax.experimental import pallas as pl
from jax.experimental.pallas import tpu as pltpu

H = 128             # LSTM hidden size per direction
D_IN = 187          # LSTM input size == fc3 output size
D_PAD = 256         # padded input feature width (lane/K alignment)
D_FC = 256          # fc width (= 2 * H)
D_OUT_PAD = 256     # lane-dense padded fc3 output width (slice back to 187 outside)
NEG_SLOPE = 0.01    # F.leaky_relu default
DROP_P = 0.2        # F.dropout(p=0.2), functional default training=True


# ----------------------------- LSTM kernel ---------------------------------

def _lstm_kernel(x_ref, wih_ref, whh_ref, b_ref, out_ref, gi_sc, h_sc, c_sc):
    """One grid program per direction (d = 0 forward, d = 1 backward).

    x_ref  : (T*Bp, D_PAD)   time-major, batch padded to Bp (multiple of 8)
    wih_ref: (1, D_PAD, 4H)  this direction's input weights (pre-transposed)
    whh_ref: (1, H, 4H)      this direction's recurrent weights
    b_ref  : (1, 1, 4H)      b_ih + b_hh
    out_ref: (T*Bp, H)       column-half d of the fused (T*Bp, 2H) output
    gi_sc  : (T*Bp, 4H)      hoisted input-projection scratch
    h_sc/c_sc : (Bp, H)      recurrent state scratch
    """
    d = pl.program_id(0)
    Bp = h_sc.shape[0]
    N = x_ref.shape[0]
    T = N // Bp

    # Hoisted input projection: one big matmul (M = T*Bp) instead of T tiny
    # M=Bp matmuls on the strictly serial recurrence path.
    gi_sc[...] = (jnp.dot(x_ref[...], wih_ref[0],
                          preferred_element_type=jnp.float32) + b_ref[0])

    h_sc[...] = jnp.zeros_like(h_sc)
    c_sc[...] = jnp.zeros_like(c_sc)

    @pl.loop(0, T)
    def _(t):
        # forward direction walks t upward, backward direction walks it downward
        idx = jnp.where(d == 0, t, T - 1 - t)
        row = idx * Bp
        gates = gi_sc[pl.ds(row, Bp), :] + jnp.dot(
            h_sc[...], whh_ref[0], preferred_element_type=jnp.float32)
        # PyTorch gate order: i, f, g, o
        i = jax.nn.sigmoid(gates[:, 0 * H:1 * H])
        f = jax.nn.sigmoid(gates[:, 1 * H:2 * H])
        g = jnp.tanh(gates[:, 2 * H:3 * H])
        o = jax.nn.sigmoid(gates[:, 3 * H:4 * H])
        c = f * c_sc[...] + i * g
        h = o * jnp.tanh(c)
        c_sc[...] = c
        h_sc[...] = h
        out_ref[pl.ds(row, Bp), :] = h


def lstm_bidir(x_flat, T, Bp, p):
    """x_flat: (T*Bp, D_PAD) time-major -> (T*Bp, 2H) fused bi-directional output."""
    N = T * Bp
    return pl.pallas_call(
        _lstm_kernel,
        grid=(2,),
        out_shape=jax.ShapeDtypeStruct((N, 2 * H), jnp.float32),
        in_specs=[
            pl.BlockSpec((N, D_PAD), lambda d: (0, 0)),
            pl.BlockSpec((1, D_PAD, 4 * H), lambda d: (d, 0, 0)),
            pl.BlockSpec((1, H, 4 * H), lambda d: (d, 0, 0)),
            pl.BlockSpec((1, 1, 4 * H), lambda d: (d, 0, 0)),
        ],
        out_specs=pl.BlockSpec((N, H), lambda d: (0, d)),
        scratch_shapes=[
            pltpu.VMEM((N, 4 * H), jnp.float32),   # hoisted input projection
            pltpu.VMEM((Bp, H), jnp.float32),      # h state
            pltpu.VMEM((Bp, H), jnp.float32),      # c state
        ],
        compiler_params=pltpu.CompilerParams(
            dimension_semantics=("parallel",)),
    )(x_flat, p["w_ih"], p["w_hh"], p["b"])


# ------------------------------ FC kernel -----------------------------------

def _fc_kernel(x_ref, w1_ref, b1_ref, w2_ref, b2_ref, w3_ref, b3_ref,
               mask_ref, out_ref):
    """leaky_relu(fc1) -> leaky_relu(fc2) -> dropout -> fc3 on a (tile_n, 256) row tile."""
    def leaky(v):
        return jnp.where(v > 0, v, NEG_SLOPE * v)

    h1 = leaky(jnp.dot(x_ref[...], w1_ref[...],
                       preferred_element_type=jnp.float32) + b1_ref[...])
    h2 = leaky(jnp.dot(h1, w2_ref[...],
                       preferred_element_type=jnp.float32) + b2_ref[...])
    # Dropout: mask is pre-scaled to {0, 1/(1-p)} in the wrapper -> single multiply.
    h2 = h2 * mask_ref[...]
    # w3/b3 are zero-padded to 256 output columns so this store is lane-dense.
    out_ref[...] = (jnp.dot(h2, w3_ref[...],
                            preferred_element_type=jnp.float32) + b3_ref[...])


def fc_stack(x, mask, p):
    N = x.shape[0]                      # always a multiple of 8 (Bp padded)
    tile_n = N if N <= 512 else 512     # row tile; sized to fit v7x's 64 MiB VMEM
    grid = (pl.cdiv(N, tile_n),)
    row_spec = pl.BlockSpec((tile_n, D_FC), lambda i: (i, 0))
    w_spec = pl.BlockSpec((D_FC, D_FC), lambda i: (0, 0))
    b_spec = pl.BlockSpec((1, D_FC), lambda i: (0, 0))
    w3_spec = pl.BlockSpec((D_FC, D_OUT_PAD), lambda i: (0, 0))
    b3_spec = pl.BlockSpec((1, D_OUT_PAD), lambda i: (0, 0))
    return pl.pallas_call(
        _fc_kernel,
        grid=grid,
        out_shape=jax.ShapeDtypeStruct((N, D_OUT_PAD), jnp.float32),
        in_specs=[row_spec, w_spec, b_spec, w_spec, b_spec, w3_spec, b3_spec,
                  row_spec],
        out_specs=pl.BlockSpec((tile_n, D_OUT_PAD), lambda i: (i, 0)),
        compiler_params=pltpu.CompilerParams(
            dimension_semantics=("parallel",)),
    )(x, p["w1"], p["b1"], p["w2"], p["b2"], p["w3"], p["b3"], mask)


# --------------------------- full forward pass -------------------------------

def generator_forward(x, params, dropout_key):
    """x: (B, T, 187) batch-first, like nn.LSTM(batch_first=True). -> (B*T, 1, 187)."""
    B, T, _ = x.shape
    Bp = max(8, ((B + 7) // 8) * 8)     # pad batch to a full sublane tile

    # Small input-side glue on the 187-wide input only (time-major + zero padding).
    x_t = jnp.transpose(x, (1, 0, 2))                                   # (T, B, 187)
    x_t = jnp.pad(x_t, ((0, 0), (0, Bp - B), (0, D_PAD - D_IN)))        # (T, Bp, 256)
    x_flat = x_t.reshape(T * Bp, D_PAD)

    lstm_out = lstm_bidir(x_flat, T, Bp, params)                        # (T*Bp, 256)

    # Dropout keep-mask, pre-scaled by 1/(1-p).  F.dropout defaults to training=True.
    # TODO(synk): cannot bit-match torch's dropout RNG stream; distribution matches.
    N = T * Bp
    keep = jax.random.bernoulli(dropout_key, 1.0 - DROP_P, (N, D_FC))
    mask = keep.astype(jnp.float32) * (1.0 / (1.0 - DROP_P))

    y = fc_stack(lstm_out, mask, params)                                # (N, 256)

    # Restore PyTorch's batch-major row order (x.view(-1, 256) on batch-first output)
    # and drop the batch / output-column padding — only on the small final tensor.
    y = y.reshape(T, Bp, D_OUT_PAD)[:, :B, :D_IN]                       # (T, B, 187)
    y = jnp.transpose(y, (1, 0, 2)).reshape(B * T, D_IN)                # (B*T, 187)
    return y[:, None, :]                                                # (B*T, 1, 187)


# ------------------------- deterministic param init --------------------------

def init_params(key):
    ks = jax.random.split(key, 14)

    def u(k, shape, bound):
        return jax.random.uniform(k, shape, jnp.float32, -bound, bound)

    lb = 1.0 / (H ** 0.5)          # LSTM init bound (1/sqrt(hidden))
    fb = 1.0 / (D_FC ** 0.5)       # Linear init bound (1/sqrt(fan_in))

    def lstm_dir(k0, k1, k2, k3):
        w_ih = u(k0, (4 * H, D_IN), lb)        # PyTorch layout (4H, 187)
        w_hh = u(k1, (4 * H, H), lb)           # (4H, H)
        b = u(k2, (4 * H,), lb) + u(k3, (4 * H,), lb)   # b_ih + b_hh
        # pre-transpose for right-multiply + zero-pad K from 187 to 256
        w_ih_t = jnp.zeros((D_PAD, 4 * H), jnp.float32).at[:D_IN].set(w_ih.T)
        return w_ih_t, w_hh.T, b[None, :]

    wif, whf, bf = lstm_dir(ks[0], ks[1], ks[2], ks[3])
    wib, whb, bb = lstm_dir(ks[4], ks[5], ks[6], ks[7])

    fc1_w = u(ks[8], (D_FC, D_FC), fb); fc1_b = u(ks[9], (D_FC,), fb)
    fc2_w = u(ks[10], (D_FC, D_FC), fb); fc2_b = u(ks[11], (D_FC,), fb)
    fc3_w = u(ks[12], (D_IN, D_FC), fb); fc3_b = u(ks[13], (D_IN,), fb)

    # fc3 zero-padded to 256 output columns (lane-dense store in the kernel).
    w3 = jnp.zeros((D_FC, D_OUT_PAD), jnp.float32).at[:, :D_IN].set(fc3_w.T)
    b3 = jnp.zeros((1, D_OUT_PAD), jnp.float32).at[0, :D_IN].set(fc3_b)

    return {
        "w_ih": jnp.stack([wif, wib]),      # (2, 256, 512)
        "w_hh": jnp.stack([whf, whb]),      # (2, 128, 512)
        "b":    jnp.stack([bf, bb]),        # (2, 1, 512)
        "w1": fc1_w.T, "b1": fc1_b[None, :],
        "w2": fc2_w.T, "b2": fc2_b[None, :],
        "w3": w3, "b3": b3,
    }


if __name__ == "__main__":
    key = jax.random.PRNGKey(0)
    pkey, xkey, dkey = jax.random.split(key, 3)
    params = init_params(pkey)

    B, T = 2, 8
    x = jax.random.normal(xkey, (B, T, D_IN), dtype=jnp.float32)

    out = generator_forward(x, params, dkey)
    out = jax.block_until_ready(out)
    assert out.shape == (B * T, 1, D_IN), out.shape
    assert bool(jnp.all(jnp.isfinite(out)))
    print("KERNEL_OK")
</pallas_src>

<mosaic_0001>
module attributes {stable_mosaic.version = 11 : i64} {
  func.func @_lstm_kernel(%arg0: i32, %arg1: memref<64x256xf32, #tpu.memory_space<vmem>>, %arg2: memref<1x256x512xf32, #tpu.memory_space<vmem>>, %arg3: memref<1x128x512xf32, #tpu.memory_space<vmem>>, %arg4: memref<1x1x512xf32, #tpu.memory_space<vmem>>, %arg5: memref<64x128xf32, #tpu.memory_space<vmem>>, %arg6: memref<64x512xf32, #tpu.memory_space<vmem>>, %arg7: memref<8x128xf32, #tpu.memory_space<vmem>>, %arg8: memref<8x128xf32, #tpu.memory_space<vmem>>) attributes {dimension_semantics = [#tpu.dimension_semantics<parallel>], iteration_bounds = array<i64: 2>, scalar_prefetch = 0 : i64, scratch_operands = 3 : i64, tpu.core_type = #tpu.core_type<tc>, window_params = [{pipeline_mode = #tpu.pipeline_mode<synchronous>, transform_indices = @transform_0, window_bounds = array<i64: 64, 256>}, {transform_indices = @transform_1, window_bounds = array<i64: 1, 256, 512>}, {transform_indices = @transform_2, window_bounds = array<i64: 1, 128, 512>}, {transform_indices = @transform_3, window_bounds = array<i64: 1, 1, 512>}, {transform_indices = @transform_4, window_bounds = array<i64: 64, 128>}]} {
    %c0 = arith.constant 0 : index
    %c0_0 = arith.constant 0 : index
    %0 = vector.load %arg1[%c0, %c0_0] : memref<64x256xf32, #tpu.memory_space<vmem>>, vector<64x256xf32>
    %c0_1 = arith.constant 0 : index
    %c0_2 = arith.constant 0 : index
    %c0_3 = arith.constant 0 : index
    %1 = vector.load %arg2[%c0_1, %c0_2, %c0_3] : memref<1x256x512xf32, #tpu.memory_space<vmem>>, vector<1x256x512xf32>
    %2 = vector.shape_cast %1 : vector<1x256x512xf32> to vector<256x512xf32>
    %cst = arith.constant dense<0.000000e+00> : vector<64x512xf32>
    %3 = tpu.matmul %0, %2, %cst {dimension_numbers = #tpu.dot_dimension_numbers<[1], [0], [0], [1], [0, 0, 1, 1], [], []>} : vector<64x256xf32>, vector<256x512xf32>, vector<64x512xf32> -> vector<64x512xf32>
    %c0_4 = arith.constant 0 : index
    %c0_5 = arith.constant 0 : index
    %c0_6 = arith.constant 0 : index
    %4 = vector.load %arg4[%c0_4, %c0_5, %c0_6] : memref<1x1x512xf32, #tpu.memory_space<vmem>>, vector<1x1x512xf32>
    %5 = vector.shape_cast %4 : vector<1x1x512xf32> to vector<1x512xf32>
    %6 = vector.broadcast %5 : vector<1x512xf32> to vector<64x512xf32>
    %7 = arith.addf %3, %6 : vector<64x512xf32>
    %c0_7 = arith.constant 0 : index
    %c0_8 = arith.constant 0 : index
    %8 = vector.load %arg6[%c0_7, %c0_8] : memref<64x512xf32, #tpu.memory_space<vmem>>, vector<64x512xf32>
    tpu.vector_store %arg6[%c0_7, %c0_8], %7 {strides = array<i32>} : memref<64x512xf32, #tpu.memory_space<vmem>>, vector<64x512xf32>,
    %cst_9 = arith.constant 0.000000e+00 : f32
    %9 = vector.broadcast %cst_9 : f32 to vector<8x128xf32>
    %c0_10 = arith.constant 0 : index
    %c0_11 = arith.constant 0 : index
    %10 = vector.load %arg7[%c0_10, %c0_11] : memref<8x128xf32, #tpu.memory_space<vmem>>, vector<8x128xf32>
    tpu.vector_store %arg7[%c0_10, %c0_11], %9 {strides = array<i32>} : memref<8x128xf32, #tpu.memory_space<vmem>>, vector<8x128xf32>,
    %cst_12 = arith.constant 0.000000e+00 : f32
    %11 = vector.broadcast %cst_12 : f32 to vector<8x128xf32>
    %c0_13 = arith.constant 0 : index
    %c0_14 = arith.constant 0 : index
    %12 = vector.load %arg8[%c0_13, %c0_14] : memref<8x128xf32, #tpu.memory_space<vmem>>, vector<8x128xf32>
    tpu.vector_store %arg8[%c0_13, %c0_14], %11 {strides = array<i32>} : memref<8x128xf32, #tpu.memory_space<vmem>>, vector<8x128xf32>,
    %c0_i32 = arith.constant 0 : i32
    %c8_i32 = arith.constant 8 : i32
    %13 = arith.addi %c0_i32, %c8_i32 : i32
    %c1_i32 = arith.constant 1 : i32
    scf.for %arg9 = %c0_i32 to %13 step %c1_i32  : i32 {
      %c1_i32_16 = arith.constant 1 : i32
      %14 = arith.muli %arg9, %c1_i32_16 : i32
      %c0_i32_17 = arith.constant 0 : i32
      %15 = arith.addi %c0_i32_17, %14 : i32
      %c0_i32_18 = arith.constant 0 : i32
      %16 = arith.cmpi eq, %arg0, %c0_i32_18 : i32
      %c7_i32 = arith.constant 7 : i32
      %17 = arith.subi %c7_i32, %15 : i32
      %18 = arith.select %16, %15, %17 : i32
      %c8_i32_19 = arith.constant 8 : i32
      %19 = arith.muli %18, %c8_i32_19 : i32
      %20 = arith.index_cast %19 : i32 to index
      %c0_20 = arith.constant 0 : index
      %21 = vector.load %arg6[%20, %c0_20] : memref<64x512xf32, #tpu.memory_space<vmem>>, vector<8x512xf32>
      %c0_21 = arith.constant 0 : index
      %c0_22 = arith.constant 0 : index
      %22 = vector.load %arg7[%c0_21, %c0_22] : memref<8x128xf32, #tpu.memory_space<vmem>>, vector<8x128xf32>
      %c0_23 = arith.constant 0 : index
      %c0_24 = arith.constant 0 : index
      %c0_25 = arith.constant 0 : index
      %23 = vector.load %arg3[%c0_23, %c0_24, %c0_25] : memref<1x128x512xf32, #tpu.memory_space<vmem>>, vector<1x128x512xf32>
      %24 = vector.shape_cast %23 : vector<1x128x512xf32> to vector<128x512xf32>
      %cst_26 = arith.constant dense<0.000000e+00> : vector<8x512xf32>
      %25 = tpu.matmul %22, %24, %cst_26 {dimension_numbers = #tpu.dot_dimension_numbers<[1], [0], [0], [1], [0, 0, 1, 1], [], []>} : vector<8x128xf32>, vector<128x512xf32>, vector<8x512xf32> -> vector<8x512xf32>
      %26 = arith.addf %21, %25 : vector<8x512xf32>
      %27 = vector.extract_strided_slice %26 {offsets = [0, 0], sizes = [8, 128], strides = [1, 1]} : vector<8x512xf32> to vector<8x128xf32>
      %28 = arith.negf %27 : vector<8x128xf32>
      %29 = math.exp %28 : vector<8x128xf32>
      %cst_27 = arith.constant 1.000000e+00 : f32
      %30 = vector.broadcast %cst_27 : f32 to vector<8x128xf32>
      %31 = arith.addf %30, %29 : vector<8x128xf32>
      %32 = arith.divf %30, %31 : vector<8x128xf32>
      %33 = vector.extract_strided_slice %26 {offsets = [0, 128], sizes = [8, 128], strides = [1, 1]} : vector<8x512xf32> to vector<8x128xf32>
      %34 = arith.negf %33 : vector<8x128xf32>
      %35 = math.exp %34 : vector<8x128xf32>
      %cst_28 = arith.constant 1.000000e+00 : f32
      %36 = vector.broadcast %cst_28 : f32 to vector<8x128xf32>
      %37 = arith.addf %36, %35 : vector<8x128xf32>
      %38 = arith.divf %36, %37 : vector<8x128xf32>
      %39 = vector.extract_strided_slice %26 {offsets = [0, 256], sizes = [8, 128], strides = [1, 1]} : vector<8x512xf32> to vector<8x128xf32>
      %40 = math.tanh %39 : vector<8x128xf32>
      %41 = vector.extract_strided_slice %26 {offsets = [0, 384], sizes = [8, 128], strides = [1, 1]} : vector<8x512xf32> to vector<8x128xf32>
      %42 = arith.negf %41 : vector<8x128xf32>
      %43 = math.exp %42 : vector<8x128xf32>
      %cst_29 = arith.constant 1.000000e+00 : f32
      %44 = vector.broadcast %cst_29 : f32 to vector<8x128xf32>
      %45 = arith.addf %44, %43 : vector<8x128xf32>
      %46 = arith.divf %44, %45 : vector<8x128xf32>
      %c0_30 = arith.constant 0 : index
      %c0_31 = arith.constant 0 : index
      %47 = vector.load %arg8[%c0_30, %c0_31] : memref<8x128xf32, #tpu.memory_space<vmem>>, vector<8x128xf32>
      %48 = arith.mulf %38, %47 : vector<8x128xf32>
      %49 = arith.mulf %32, %40 : vector<8x128xf32>
      %50 = arith.addf %48, %49 : vector<8x128xf32>
      %51 = math.tanh %50 : vector<8x128xf32>
      %52 = arith.mulf %46, %51 : vector<8x128xf32>
      %c0_32 = arith.constant 0 : index
      %c0_33 = arith.constant 0 : index
      %53 = vector.load %arg8[%c0_32, %c0_33] : memref<8x128xf32, #tpu.memory_space<vmem>>, vector<8x128xf32>
      tpu.vector_store %arg8[%c0_32, %c0_33], %50 {strides = array<i32>} : memref<8x128xf32, #tpu.memory_space<vmem>>, vector<8x128xf32>,
      %c0_34 = arith.constant 0 : index
      %c0_35 = arith.constant 0 : index
      %54 = vector.load %arg7[%c0_34, %c0_35] : memref<8x128xf32, #tpu.memory_space<vmem>>, vector<8x128xf32>
      tpu.vector_store %arg7[%c0_34, %c0_35], %52 {strides = array<i32>} : memref<8x128xf32, #tpu.memory_space<vmem>>, vector<8x128xf32>,
      %55 = arith.index_cast %19 : i32 to index
      %c0_36 = arith.constant 0 : index
      %56 = vector.load %arg5[%55, %c0_36] : memref<64x128xf32, #tpu.memory_space<vmem>>, vector<8x128xf32>
      tpu.vector_store %arg5[%55, %c0_36], %52 {strides = array<i32>} : memref<64x128xf32, #tpu.memory_space<vmem>>, vector<8x128xf32>,
    }
    %c8_i32_15 = arith.constant 8 : i32
    return
  }
  func.func @transform_0(%arg0: i32) -> (i32, i32) {
    %c0_i32 = arith.constant 0 : i32
    %c0_i32_0 = arith.constant 0 : i32
    %c0_i32_1 = arith.constant 0 : i32
    return %c0_i32, %c0_i32_0 : i32, i32
  }
  func.func @transform_1(%arg0: i32) -> (i32, i32, i32) {
    %c0_i32 = arith.constant 0 : i32
    %c0_i32_0 = arith.constant 0 : i32
    %c0_i32_1 = arith.constant 0 : i32
    return %arg0, %c0_i32, %c0_i32_0 : i32, i32, i32
  }
  func.func @transform_2(%arg0: i32) -> (i32, i32, i32) {
    %c0_i32 = arith.constant 0 : i32
    %c0_i32_0 = arith.constant 0 : i32
    %c0_i32_1 = arith.constant 0 : i32
    return %arg0, %c0_i32, %c0_i32_0 : i32, i32, i32
  }
  func.func @transform_3(%arg0: i32) -> (i32, i32, i32) {
    %c0_i32 = arith.constant 0 : i32
    %c0_i32_0 = arith.constant 0 : i32
    %c0_i32_1 = arith.constant 0 : i32
    return %arg0, %c0_i32, %c0_i32_0 : i32, i32, i32
  }
  func.func @transform_4(%arg0: i32) -> (i32, i32) {
    %c0_i32 = arith.constant 0 : i32
    %c0_i32_0 = arith.constant 0 : i32
    return %c0_i32, %arg0 : i32, i32
  }
}

</mosaic_0001>

<llo_original>
// kernel: tpu_custom_call.1
$region0: #{tpu_custom_call.1}
  #allocation0 [shape = 'u32[]', space=smem, size = 0x4, offset = 0x4, fixed_abs, tag = 'smem constant byte address 0x4 - core index']
  #allocation1 [shape = 'u32[72,128]{1,0:T(1,128)}', space=vmem, size = 0x9000, scoped, tag = 'internal scratch']
  #allocation2 [shape = 'f32[64,512]{1,0:T(8,128)}', space=vmem, size = 0x20000, scoped, tag = 'scratch operand']
  #allocation3 [shape = 'f32[8,128]{1,0:T(8,128)}', space=vmem, size = 0x1000, scoped, tag = 'scratch operand']
  #allocation4 [shape = 'f32[8,128]{1,0:T(8,128)}', space=vmem, size = 0x1000, scoped, tag = 'scratch operand']
  %s0 = inlined_call_operand.hbm [shape: f32[64,256], index: 0, kind: input, shape index: {}]
  %s1 = inlined_call_operand.hbm [shape: f32[2,256,512], index: 1, kind: input, shape index: {}]
  %s2 = inlined_call_operand.hbm [shape: f32[2,128,512], index: 2, kind: input, shape index: {}]
  %s3 = inlined_call_operand.hbm [shape: f32[2,1,512], index: 3, kind: input, shape index: {}]
  %s4 = inlined_call_operand.hbm [shape: f32[64,256], index: 4, kind: output, shape index: {}]
  %s5 = sld [smem:[#allocation0]]
  $region72: #{tpu_custom_call.1} parent=0
    _
  %s7 = ssub.s32 1, %s5
  %s8 = scalar_select 0, %s7, %s5
  $region1: #{tpu_custom_call.1} parent=0
    #allocation5 [shape = 'u8[65536]{0}', space=vmem, size = 0x10000, scoped, tag = 'input window, operand 0, single buffered']
    #allocation6 [shape = 's32[2]{0}', space=sflag, size = 0x8, scoped, tag = 'scoped memory for tpu_custom_call.1']
    #allocation7 [shape = 's32[2]{0}', space=sflag, size = 0x8, scoped, tag = 'scoped memory for tpu_custom_call.1']
    #allocation8 [shape = 'u8[1048576]{0}', space=vmem, size = 0x100000, scoped, tag = 'input window, operand 1']
    #allocation9 [shape = 's32[2]{0}', space=sflag, size = 0x8, scoped, tag = 'scoped memory for tpu_custom_call.1']
    #allocation10 [shape = 'u8[524288]{0}', space=vmem, size = 0x80000, scoped, tag = 'input window, operand 2']
    #allocation11 [shape = 'u8[4096]{0}', space=vmem, size = 0x1000, scoped, tag = 'input window, operand 3']
    #allocation12 [shape = 's32[2]{0}', space=sflag, size = 0x8, scoped, tag = 'scoped memory for tpu_custom_call.1']
    #allocation13 [shape = 'u8[65536]{0}', space=vmem, size = 0x10000, scoped, tag = 'output window, operand 0']
    %9 = vsyncpa [#allocation6], 0
    %10 = vsyncpa [#allocation9], 0
    %s11 = scalar_lea.sflag [#allocation9], 1
    %12 = vsyncpa %s11, 0
    %13 = vsyncpa [#allocation12], 0
    %s14 = scalar_lea.sflag [#allocation12], 1
    %15 = vsyncpa %s14, 0
    %16 = vsyncpa [#allocation7], 0
    %s17 = scalar_lea.sflag [#allocation7], 1
    %18 = vsyncpa %s17, 0
    loop: start=0, step=1, limit=4
    $region2: #{tpu_custom_call.1} parent=1 // loop_pre_header
      _
    $region3: #{tpu_custom_call.1} parent=1 // loop_header
      %s20 = sphi 0, %s24
      %p21 = scmp.ge.s32.totalorder %s20, 4
      %s28 = sphi 0, %s28
      %s30 = sphi 0, %s28
      %s31 = sphi 0, %s30
      %s45 = sphi 0, %s31
      %s51 = sphi 0, %s53
      %s54 = sphi 0, %s51
      %s55 = sphi 0, %s54
      %s71 = sphi 0, %s55
      %s77 = sphi 0, %s79
      %s80 = sphi 0, %s77
      %s81 = sphi 0, %s80
      %s97 = sphi 0, %s81
      %s103 = sphi 0, %s105
      %s106 = sphi 0, %s103
      %s107 = sphi 0, %s106
      %s123 = sphi 0, %s107
      %s129 = sphi 0, %s131
      %s132 = sphi 0, %s129
      %s133 = sphi 0, %s132
      %s149 = sphi 0, %s133
    $region4: #{tpu_custom_call.1} parent=1 // loop_header_branch
      %23 = sbr.rel (%p21) target = $region8
    $region5: #{tpu_custom_call.1} parent=1 // loop_body
      %s25 = ssub.s32 %s20, 1
      %s26 = ssub.s32 %s20, 2
      %s27 = sadd.s32 %s20, 1
      %s29 = sadd.s32 %s28, 1
      %p32 = scmp.eq.s32.totalorder %s20, 1
      %p33 = scmp.ne.s32.totalorder %s28, %s30
      %p34 = scmp.eq.s32.totalorder %s20, 0
      %p35 = por %p33, %p34
      %p36 = scmp.ne.s32.totalorder %s28, %s30
      %p37 = scmp.eq.s32.totalorder %s25, 1
      %p38 = por %p36, %p37
      %p39 = scmp.ne.s32.totalorder %s30, %s31
      %p40 = scmp.eq.s32.totalorder %s25, 0
      %p41 = por %p39, %p40
      %p42 = scmp.ne.s32.totalorder %s30, %s31
      %p43 = scmp.eq.s32.totalorder %s26, 1
      %p44 = por %p42, %p43
      %p46 = scmp.ne.s32.totalorder %s31, %s45
      %p47 = scmp.eq.s32.totalorder %s26, 0
      %p48 = por %p46, %p47
      %s49 = ssub.s32 %s20, %s27
      %p50 = scmp.eq.s32.totalorder %s49, 0
      %s52 = sadd.s32 %s51, 1
      %s53 = scalar_select %p50, %s51, %s52
      %p56 = pneg %p50
      %p57 = scmp.eq.s32.totalorder %s20, 1
      %p58 = por %p56, %p57
      %p59 = scmp.ne.s32.totalorder %s51, %s54
      %p60 = scmp.eq.s32.totalorder %s20, 0
      %p61 = por %p59, %p60
      %p62 = scmp.ne.s32.totalorder %s51, %s54
      %p63 = scmp.eq.s32.totalorder %s25, 1
      %p64 = por %p62, %p63
      %p65 = scmp.ne.s32.totalorder %s54, %s55
      %p66 = scmp.eq.s32.totalorder %s25, 0
      %p67 = por %p65, %p66
      %p68 = scmp.ne.s32.totalorder %s54, %s55
      %p69 = scmp.eq.s32.totalorder %s26, 1
      %p70 = por %p68, %p69
      %p72 = scmp.ne.s32.totalorder %s55, %s71
      %p73 = scmp.eq.s32.totalorder %s26, 0
      %p74 = por %p72, %p73
      %s75 = ssub.s32 %s20, %s27
      %p76 = scmp.eq.s32.totalorder %s75, 0
      %s78 = sadd.s32 %s77, 1
      %s79 = scalar_select %p76, %s77, %s78
      %p82 = pneg %p76
      %p83 = scmp.eq.s32.totalorder %s20, 1
      %p84 = por %p82, %p83
      %p85 = scmp.ne.s32.totalorder %s77, %s80
      %p86 = scmp.eq.s32.totalorder %s20, 0
      %p87 = por %p85, %p86
      %p88 = scmp.ne.s32.totalorder %s77, %s80
      %p89 = scmp.eq.s32.totalorder %s25, 1
      %p90 = por %p88, %p89
      %p91 = scmp.ne.s32.totalorder %s80, %s81
      %p92 = scmp.eq.s32.totalorder %s25, 0
      %p93 = por %p91, %p92
      %p94 = scmp.ne.s32.totalorder %s80, %s81
      %p95 = scmp.eq.s32.totalorder %s26, 1
      %p96 = por %p94, %p95
      %p98 = scmp.ne.s32.totalorder %s81, %s97
      %p99 = scmp.eq.s32.totalorder %s26, 0
      %p100 = por %p98, %p99
      %s101 = ssub.s32 %s20, %s27
      %p102 = scmp.eq.s32.totalorder %s101, 0
      %s104 = sadd.s32 %s103, 1
      %s105 = scalar_select %p102, %s103, %s104
      %p108 = pneg %p102
      %p109 = scmp.eq.s32.totalorder %s20, 1
      %p110 = por %p108, %p109
      %p111 = scmp.ne.s32.totalorder %s103, %s106
      %p112 = scmp.eq.s32.totalorder %s20, 0
      %p113 = por %p111, %p112
      %p114 = scmp.ne.s32.totalorder %s103, %s106
      %p115 = scmp.eq.s32.totalorder %s25, 1
      %p116 = por %p114, %p115
      %p117 = scmp.ne.s32.totalorder %s106, %s107
      %p118 = scmp.eq.s32.totalorder %s25, 0
      %p119 = por %p117, %p118
      %p120 = scmp.ne.s32.totalorder %s106, %s107
      %p121 = scmp.eq.s32.totalorder %s26, 1
      %p122 = por %p120, %p121
      %p124 = scmp.ne.s32.totalorder %s107, %s123
      %p125 = scmp.eq.s32.totalorder %s26, 0
      %p126 = por %p124, %p125
      %s127 = ssub.s32 %s20, %s27
      %p128 = scmp.eq.s32.totalorder %s127, 0
      %s130 = sadd.s32 %s129, 1
      %s131 = scalar_select %p128, %s129, %s130
      %p134 = pneg %p128
      %p135 = scmp.eq.s32.totalorder %s20, 1
      %p136 = por %p134, %p135
      %p137 = scmp.ne.s32.totalorder %s129, %s132
      %p138 = scmp.eq.s32.totalorder %s20, 0
      %p139 = por %p137, %p138
      %p140 = scmp.ne.s32.totalorder %s129, %s132
      %p141 = scmp.eq.s32.totalorder %s25, 1
      %p142 = por %p140, %p141
      %p143 = scmp.ne.s32.totalorder %s132, %s133
      %p144 = scmp.eq.s32.totalorder %s25, 0
      %p145 = por %p143, %p144
      %p146 = scmp.ne.s32.totalorder %s132, %s133
      %p147 = scmp.eq.s32.totalorder %s26, 1
      %p148 = por %p146, %p147
      %p150 = scmp.ne.s32.totalorder %s133, %s149
      %p151 = scmp.eq.s32.totalorder %s26, 0
      %p152 = por %p150, %p151
      %p153 = scmp.le.s32.totalorder 1, %s20
      %p154 = scmp.lt.s32.totalorder %s20, 3
      %p155 = pnand %p153, %p154
      %p156 = pneg %p155
      // Predicated region
      $region9: #{tpu_custom_call.1} parent=5 // pred_check
        _
      $region10: #{tpu_custom_call.1} parent=5 // pred_check_branch
        %158 = sbr.rel (%p155) target = $region12
      $region11: #{tpu_custom_call.1} parent=5 // pred_region
        %s159 = ssub.s32 %s20, 1
        // Predicated region
        $region13: #{tpu_custom_call.1} parent=11 // pred_check
          %p160 = pneg %p41
        $region14: #{tpu_custom_call.1} parent=11 // pred_check_branch
          %162 = sbr.rel (%p160) target = $region16
        $region15: #{tpu_custom_call.1} parent=11 // pred_region
          %164 = vsyncadd [#allocation6], 0
          %s165 = sshll.u32 %s0, 4
          %s166 = int_to_ptr.hbm [resolvable:$true] %s165
          %s167 = sshll.u32 [#allocation5], 4
          %s168 = int_to_ptr.vmem [resolvable:$true] %s167
          %173 = dma.hbm_to_vmem [thread:$0]  %s166, 2048, %s168, [#allocation6], 256, 256, 16
        $region16: #{tpu_custom_call.1} parent=11 // pred_fallthru
          _
      $region12: #{tpu_custom_call.1} parent=5 // pred_fallthru
        _
      %p174 = scmp.lt.s32.totalorder %s20, 2
      // Predicated region
      $region17: #{tpu_custom_call.1} parent=5 // pred_check
        %p175 = pneg %p174
      $region18: #{tpu_custom_call.1} parent=5 // pred_check_branch
        %177 = sbr.rel (%p175) target = $region20
      $region19: #{tpu_custom_call.1} parent=5 // pred_region
        // Predicated region
        $region21: #{tpu_custom_call.1} parent=19 // pred_check
          %p178 = pneg %p61
        $region22: #{tpu_custom_call.1} parent=19 // pred_check_branch
          %180 = sbr.rel (%p178) target = $region24
        $region23: #{tpu_custom_call.1} parent=19 // pred_region
          %s181 = sand.u32 %s20, 1
          %s182 = scalar_lea.sflag [#allocation9], %s181
          %s183 = sand.u32 %s51, 1
          %s184 = smul.addr %s183, 1024
          %s185 = scalar_lea.vmem [#allocation8], %s184
          %187 = vsyncadd %s182, 0
          %s188 = smul.addr %s20, 128
          %s189 = smul.addr %s188, 8
          %s190 = scalar_lea.hbm %s1, %s189
          %s191 = sshll.u32 %s190, 4
          %s192 = int_to_ptr.hbm [resolvable:$true] %s191
          %s193 = sshll.u32 %s185, 4
          %s194 = int_to_ptr.vmem [resolvable:$true] %s193
          %199 = dma.hbm_to_vmem [thread:$0]  %s192, 16384, %s194, %s182, 512, 512, 32
        $region24: #{tpu_custom_call.1} parent=19 // pred_fallthru
          _
        // Predicated region
        $region25: #{tpu_custom_call.1} parent=19 // pred_check
          %p200 = pneg %p87
        $region26: #{tpu_custom_call.1} parent=19 // pred_check_branch
          %202 = sbr.rel (%p200) target = $region28
        $region27: #{tpu_custom_call.1} parent=19 // pred_region
          %s203 = sand.u32 %s20, 1
          %s204 = scalar_lea.sflag [#allocation9], %s203
          %s205 = sand.u32 %s77, 1
          %s206 = smul.addr %s205, 512
          %s207 = scalar_lea.vmem [#allocation10], %s206
          %209 = vsyncadd %s204, 0
          %s210 = smul.addr %s20, 64
          %s211 = smul.addr %s210, 8
          %s212 = scalar_lea.hbm %s2, %s211
          %s213 = sshll.u32 %s212, 4
          %s214 = int_to_ptr.hbm [resolvable:$true] %s213
          %s215 = sshll.u32 %s207, 4
          %s216 = int_to_ptr.vmem [resolvable:$true] %s215
          %221 = dma.hbm_to_vmem [thread:$0]  %s214, 8192, %s216, %s204, 512, 512, 32
        $region28: #{tpu_custom_call.1} parent=19 // pred_fallthru
          _
        // Predicated region
        $region29: #{tpu_custom_call.1} parent=19 // pred_check
          %p222 = pneg %p113
        $region30: #{tpu_custom_call.1} parent=19 // pred_check_branch
          %224 = sbr.rel (%p222) target = $region32
        $region31: #{tpu_custom_call.1} parent=19 // pred_region
          %s225 = sand.u32 %s103, 1
          %s226 = scalar_lea.sflag [#allocation12], %s225
          %s227 = sand.u32 %s103, 1
          %s228 = smul.addr %s227, 4
          %s229 = scalar_lea.vmem [#allocation11], %s228
          %231 = vsyncadd %s226, 0
          %s232 = smul.addr %s20, 4
          %s233 = scalar_lea.hbm %s3, %s232
          %s235 = sshll.u32 %s233, 4
          %s236 = int_to_ptr.hbm [resolvable:$true] %s235
          %s237 = sshll.u32 %s229, 4
          %s238 = int_to_ptr.vmem [resolvable:$true] %s237
          %240 = dma.hbm_to_vmem [thread:$0]  %s236, 64, %s238, %s226
        $region32: #{tpu_custom_call.1} parent=19 // pred_fallthru
          _
      $region20: #{tpu_custom_call.1} parent=5 // pred_fallthru
        _
      %p241 = scmp.le.s32.totalorder 1, %s20
      %p242 = scmp.lt.s32.totalorder %s20, 3
      %p243 = pnand %p241, %p242
      %p244 = pneg %p243
      // Predicated region
      $region33: #{tpu_custom_call.1} parent=5 // pred_check
        _
      $region34: #{tpu_custom_call.1} parent=5 // pred_check_branch
        %246 = sbr.rel (%p243) target = $region36
      $region35: #{tpu_custom_call.1} parent=5 // pred_region
        %s247 = ssub.s32 %s20, 1
        // Predicated region
        $region37: #{tpu_custom_call.1} parent=35 // pred_check
          %p248 = pneg %p41
        $region38: #{tpu_custom_call.1} parent=35 // pred_check_branch
          %250 = sbr.rel (%p248) target = $region40
        $region39: #{tpu_custom_call.1} parent=35 // pred_region
          %252 = dma.done [#allocation6], 2048
        $region40: #{tpu_custom_call.1} parent=35 // pred_fallthru
          _
        %s253 = sand.u32 %s25, 1
        %s254 = scalar_lea.sflag [#allocation9], %s253
        %s255 = sand.u32 %s54, 1
        %s256 = smul.addr %s255, 1024
        %s257 = scalar_lea.vmem [#allocation8], %s256
        // Predicated region
        $region41: #{tpu_custom_call.1} parent=35 // pred_check
          %p258 = pneg %p67
        $region42: #{tpu_custom_call.1} parent=35 // pred_check_branch
          %260 = sbr.rel (%p258) target = $region44
        $region43: #{tpu_custom_call.1} parent=35 // pred_region
          %262 = dma.done %s254, 16384
        $region44: #{tpu_custom_call.1} parent=35 // pred_fallthru
          _
        %s263 = sand.u32 %s25, 1
        %s264 = scalar_lea.sflag [#allocation9], %s263
        %s265 = sand.u32 %s80, 1
        %s266 = smul.addr %s265, 512
        %s267 = scalar_lea.vmem [#allocation10], %s266
        // Predicated region
        $region45: #{tpu_custom_call.1} parent=35 // pred_check
          %p268 = pneg %p93
        $region46: #{tpu_custom_call.1} parent=35 // pred_check_branch
          %270 = sbr.rel (%p268) target = $region48
        $region47: #{tpu_custom_call.1} parent=35 // pred_region
          %272 = dma.done %s264, 8192
        $region48: #{tpu_custom_call.1} parent=35 // pred_fallthru
          _
        %s273 = sand.u32 %s106, 1
        %s274 = scalar_lea.sflag [#allocation12], %s273
        %s275 = sand.u32 %s106, 1
        %s276 = smul.addr %s275, 4
        %s277 = scalar_lea.vmem [#allocation11], %s276
        // Predicated region
        $region49: #{tpu_custom_call.1} parent=35 // pred_check
          %p278 = pneg %p119
        $region50: #{tpu_custom_call.1} parent=35 // pred_check_branch
          %280 = sbr.rel (%p278) target = $region52
        $region51: #{tpu_custom_call.1} parent=35 // pred_region
          %282 = dma.done %s274, 64
        $region52: #{tpu_custom_call.1} parent=35 // pred_fallthru
          _
        %p283 = pneg %p41
        %p284 = pneg %p38
        %s285 = sand.u32 %s25, 1
        %s286 = scalar_lea.sflag [#allocation9], %s285
        %s287 = sand.u32 %s54, 1
        %s288 = smul.addr %s287, 1024
        %s289 = scalar_lea.vmem [#allocation8], %s288
        %p290 = pneg %p67
        %p291 = pneg %p64
        %s292 = sand.u32 %s25, 1
        %s293 = scalar_lea.sflag [#allocation9], %s292
        %s294 = sand.u32 %s80, 1
        %s295 = smul.addr %s294, 512
        %s296 = scalar_lea.vmem [#allocation10], %s295
        %p297 = pneg %p93
        %p298 = pneg %p90
        %s299 = sand.u32 %s106, 1
        %s300 = scalar_lea.sflag [#allocation12], %s299
        %s301 = sand.u32 %s106, 1
        %s302 = smul.addr %s301, 4
        %s303 = scalar_lea.vmem [#allocation11], %s302
        %p304 = pneg %p119
        %p305 = pneg %p116
        %p306 = pneg %p145
        %p307 = pneg %p142
        %s308 = sand.u32 %s132, 1
        %s309 = scalar_lea.sflag [#allocation7], %s308
        %s310 = sand.u32 %s132, 1
        %s311 = smul.addr %s310, 64
        %s312 = scalar_lea.vmem [#allocation13], %s311
        %v313 = vld [vmem:[#allocation5] sm:$0xff]
        %v314 = vld [vmem:[#allocation5 + $0x8] sm:$0xff]
        %v315 = vld [vmem:[#allocation5 + $0x10] sm:$0xff]
        %v316 = vld [vmem:[#allocation5 + $0x18] sm:$0xff]
        %v317 = vld [vmem:[#allocation5 + $0x20] sm:$0xff]
        %v318 = vld [vmem:[#allocation5 + $0x28] sm:$0xff]
        %v319 = vld [vmem:[#allocation5 + $0x30] sm:$0xff]
        %v320 = vld [vmem:[#allocation5 + $0x38] sm:$0xff]
        %v321 = vld [vmem:[#allocation5 + $0x40] sm:$0xff]
        %v322 = vld [vmem:[#allocation5 + $0x48] sm:$0xff]
        %v323 = vld [vmem:[#allocation5 + $0x50] sm:$0xff]
        %v324 = vld [vmem:[#allocation5 + $0x58] sm:$0xff]
        %v325 = vld [vmem:[#allocation5 + $0x60] sm:$0xff]
        %v326 = vld [vmem:[#allocation5 + $0x68] sm:$0xff]
        %v327 = vld [vmem:[#allocation5 + $0x70] sm:$0xff]
        %v328 = vld [vmem:[#allocation5 + $0x78] sm:$0xff]
        %v329 = vld [vmem:[%s257] sm:$0xff]
        %v330 = vld [vmem:[%s257 + $0x8] sm:$0xff]
        %v331 = vld [vmem:[%s257 + $0x10] sm:$0xff]
        %v332 = vld [vmem:[%s257 + $0x18] sm:$0xff]
        %v333 = vld [vmem:[%s257 + $0x20] sm:$0xff]
        %v334 = vld [vmem:[%s257 + $0x28] sm:$0xff]
        %v335 = vld [vmem:[%s257 + $0x30] sm:$0xff]
        %v336 = vld [vmem:[%s257 + $0x38] sm:$0xff]
        %v337 = vld [vmem:[%s257 + $0x40] sm:$0xff]
        %v338 = vld [vmem:[%s257 + $0x48] sm:$0xff]
        %v339 = vld [vmem:[%s257 + $0x50] sm:$0xff]
        %v340 = vld [vmem:[%s257 + $0x58] sm:$0xff]
        %v341 = vld [vmem:[%s257 + $0x60] sm:$0xff]
        %v342 = vld [vmem:[%s257 + $0x68] sm:$0xff]
        %v343 = vld [vmem:[%s257 + $0x70] sm:$0xff]
        %v344 = vld [vmem:[%s257 + $0x78] sm:$0xff]
        %v345 = vld [vmem:[%s257 + $0x80] sm:$0xff]
        %v346 = vld [vmem:[%s257 + $0x88] sm:$0xff]
        %v347 = vld [vmem:[%s257 + $0x90] sm:$0xff]
        %v348 = vld [vmem:[%s257 + $0x98] sm:$0xff]
        %v349 = vld [vmem:[%s257 + $0xa0] sm:$0xff]
        %v350 = vld [vmem:[%s257 + $0xa8] sm:$0xff]
        %v351 = vld [vmem:[%s257 + $0xb0] sm:$0xff]
        %v352 = vld [vmem:[%s257 + $0xb8] sm:$0xff]
        %v353 = vld [vmem:[%s257 + $0xc0] sm:$0xff]
        %v354 = vld [vmem:[%s257 + $0xc8] sm:$0xff]
        %v355 = vld [vmem:[%s257 + $0xd0] sm:$0xff]
        %v356 = vld [vmem:[%s257 + $0xd8] sm:$0xff]
        %v357 = vld [vmem:[%s257 + $0xe0] sm:$0xff]
        %v358 = vld [vmem:[%s257 + $0xe8] sm:$0xff]
        %v359 = vld [vmem:[%s257 + $0xf0] sm:$0xff]
        %v360 = vld [vmem:[%s257 + $0xf8] sm:$0xff]
        %v361 = vld [vmem:[%s257 + $0x100] sm:$0xff]
        %v362 = vld [vmem:[%s257 + $0x108] sm:$0xff]
        %v363 = vld [vmem:[%s257 + $0x110] sm:$0xff]
        %v364 = vld [vmem:[%s257 + $0x118] sm:$0xff]
        %v365 = vld [vmem:[%s257 + $0x120] sm:$0xff]
        %v366 = vld [vmem:[%s257 + $0x128] sm:$0xff]
        %v367 = vld [vmem:[%s257 + $0x130] sm:$0xff]
        %v368 = vld [vmem:[%s257 + $0x138] sm:$0xff]
        %v369 = vld [vmem:[%s257 + $0x140] sm:$0xff]
        %v370 = vld [vmem:[%s257 + $0x148] sm:$0xff]
        %v371 = vld [vmem:[%s257 + $0x150] sm:$0xff]
        %v372 = vld [vmem:[%s257 + $0x158] sm:$0xff]
        %v373 = vld [vmem:[%s257 + $0x160] sm:$0xff]
        %v374 = vld [vmem:[%s257 + $0x168] sm:$0xff]
        %v375 = vld [vmem:[%s257 + $0x170] sm:$0xff]
        %v376 = vld [vmem:[%s257 + $0x178] sm:$0xff]
        %v377 = vld [vmem:[%s257 + $0x180] sm:$0xff]
        %v378 = vld [vmem:[%s257 + $0x188] sm:$0xff]
        %v379 = vld [vmem:[%s257 + $0x190] sm:$0xff]
        %v380 = vld [vmem:[%s257 + $0x198] sm:$0xff]
        %v381 = vld [vmem:[%s257 + $0x1a0] sm:$0xff]
        %v382 = vld [vmem:[%s257 + $0x1a8] sm:$0xff]
        %v383 = vld [vmem:[%s257 + $0x1b0] sm:$0xff]
        %v384 = vld [vmem:[%s257 + $0x1b8] sm:$0xff]
        %v385 = vld [vmem:[%s257 + $0x1c0] sm:$0xff]
        %v386 = vld [vmem:[%s257 + $0x1c8] sm:$0xff]
        %v387 = vld [vmem:[%s257 + $0x1d0] sm:$0xff]
        %v388 = vld [vmem:[%s257 + $0x1d8] sm:$0xff]
        %v389 = vld [vmem:[%s257 + $0x1e0] sm:$0xff]
        %v390 = vld [vmem:[%s257 + $0x1e8] sm:$0xff]
        %v391 = vld [vmem:[%s257 + $0x1f0] sm:$0xff]
        %v392 = vld [vmem:[%s257 + $0x1f8] sm:$0xff]
        %v393 = vld [vmem:[%s257 + $0x200] sm:$0xff]
        %v394 = vld [vmem:[%s257 + $0x208] sm:$0xff]
        %v395 = vld [vmem:[%s257 + $0x210] sm:$0xff]
        %v396 = vld [vmem:[%s257 + $0x218] sm:$0xff]
        %v397 = vld [vmem:[%s257 + $0x220] sm:$0xff]
        %v398 = vld [vmem:[%s257 + $0x228] sm:$0xff]
        %v399 = vld [vmem:[%s257 + $0x230] sm:$0xff]
        %v400 = vld [vmem:[%s257 + $0x238] sm:$0xff]
        %v401 = vld [vmem:[%s257 + $0x240] sm:$0xff]
        %v402 = vld [vmem:[%s257 + $0x248] sm:$0xff]
        %v403 = vld [vmem:[%s257 + $0x250] sm:$0xff]
        %v404 = vld [vmem:[%s257 + $0x258] sm:$0xff]
        %v405 = vld [vmem:[%s257 + $0x260] sm:$0xff]
        %v406 = vld [vmem:[%s257 + $0x268] sm:$0xff]
        %v407 = vld [vmem:[%s257 + $0x270] sm:$0xff]
        %v408 = vld [vmem:[%s257 + $0x278] sm:$0xff]
        %v409 = vld [vmem:[%s257 + $0x280] sm:$0xff]
        %v410 = vld [vmem:[%s257 + $0x288] sm:$0xff]
        %v411 = vld [vmem:[%s257 + $0x290] sm:$0xff]
        %v412 = vld [vmem:[%s257 + $0x298] sm:$0xff]
        %v413 = vld [vmem:[%s257 + $0x2a0] sm:$0xff]
        %v414 = vld [vmem:[%s257 + $0x2a8] sm:$0xff]
        %v415 = vld [vmem:[%s257 + $0x2b0] sm:$0xff]
        %v416 = vld [vmem:[%s257 + $0x2b8] sm:$0xff]
        %v417 = vld [vmem:[%s257 + $0x2c0] sm:$0xff]
        %v418 = vld [vmem:[%s257 + $0x2c8] sm:$0xff]
        %v419 = vld [vmem:[%s257 + $0x2d0] sm:$0xff]
        %v420 = vld [vmem:[%s257 + $0x2d8] sm:$0xff]
        %v421 = vld [vmem:[%s257 + $0x2e0] sm:$0xff]
        %v422 = vld [vmem:[%s257 + $0x2e8] sm:$0xff]
        %v423 = vld [vmem:[%s257 + $0x2f0] sm:$0xff]
        %v424 = vld [vmem:[%s257 + $0x2f8] sm:$0xff]
        %v425 = vld [vmem:[%s257 + $0x300] sm:$0xff]
        %v426 = vld [vmem:[%s257 + $0x308] sm:$0xff]
        %v427 = vld [vmem:[%s257 + $0x310] sm:$0xff]
        %v428 = vld [vmem:[%s257 + $0x318] sm:$0xff]
        %v429 = vld [vmem:[%s257 + $0x320] sm:$0xff]
        %v430 = vld [vmem:[%s257 + $0x328] sm:$0xff]
        %v431 = vld [vmem:[%s257 + $0x330] sm:$0xff]
        %v432 = vld [vmem:[%s257 + $0x338] sm:$0xff]
        %v433 = vld [vmem:[%s257 + $0x340] sm:$0xff]
        %v434 = vld [vmem:[%s257 + $0x348] sm:$0xff]
        %v435 = vld [vmem:[%s257 + $0x350] sm:$0xff]
        %v436 = vld [vmem:[%s257 + $0x358] sm:$0xff]
        %v437 = vld [vmem:[%s257 + $0x360] sm:$0xff]
        %v438 = vld [vmem:[%s257 + $0x368] sm:$0xff]
        %v439 = vld [vmem:[%s257 + $0x370] sm:$0xff]
        %v440 = vld [vmem:[%s257 + $0x378] sm:$0xff]
        %v441 = vld [vmem:[%s257 + $0x380] sm:$0xff]
        %v442 = vld [vmem:[%s257 + $0x388] sm:$0xff]
        %v443 = vld [vmem:[%s257 + $0x390] sm:$0xff]
        %v444 = vld [vmem:[%s257 + $0x398] sm:$0xff]
        %v445 = vld [vmem:[%s257 + $0x3a0] sm:$0xff]
        %v446 = vld [vmem:[%s257 + $0x3a8] sm:$0xff]
        %v447 = vld [vmem:[%s257 + $0x3b0] sm:$0xff]
        %v448 = vld [vmem:[%s257 + $0x3b8] sm:$0xff]
        %v449 = vld [vmem:[%s257 + $0x3c0] sm:$0xff]
        %v450 = vld [vmem:[%s257 + $0x3c8] sm:$0xff]
        %v451 = vld [vmem:[%s257 + $0x3d0] sm:$0xff]
        %v452 = vld [vmem:[%s257 + $0x3d8] sm:$0xff]
        %v453 = vld [vmem:[%s257 + $0x3e0] sm:$0xff]
        %v454 = vld [vmem:[%s257 + $0x3e8] sm:$0xff]
        %v455 = vld [vmem:[%s257 + $0x3f0] sm:$0xff]
        %v456 = vld [vmem:[%s257 + $0x3f8] sm:$0xff]
        %v457 = vld [vmem:[%s277] sm:$0xf]
        %v459 = vperm.slane %v457, 0
        %v460 = vperm.slane %v457, 1
        %v461 = vperm.slane %v457, 2
        %v462 = vperm.slane %v457, 3
        %467 = vmatpush.msra.mxu0 %v389
        %468 = vmatpush.msra.mxu0 %v385
        %469 = vmatpush.msra.mxu0 %v381
        %470 = vmatpush.msra.mxu0 %v377
        %471 = vmatpush.msra.mxu0 %v373
        %472 = vmatpush.msra.mxu0 %v369
        %473 = vmatpush.msra.mxu0 %v365
        %474 = vmatpush.msra.mxu0 %v361
        %475 = vmatpush.msra.mxu0 %v357
        %476 = vmatpush.msra.mxu0 %v353
        %477 = vmatpush.msra.mxu0 %v349
        %478 = vmatpush.msra.mxu0 %v345
        %479 = vmatpush.msra.mxu0 %v341
        %480 = vmatpush.msra.mxu0 %v337
        %481 = vmatpush.msra.mxu0 %v333
        %482 = vmatpush.msra.mxu0 %v329
        %483 = vmatmul.f32.gmra.mxu0 %v313
        %v484 = vpop.f32.mrf.mxu0
        %v485 = vadd.f32 %v459, %v484
        %486 = vmatmul.f32.gmra.mxu0 %v315
        %v487 = vpop.f32.mrf.mxu0
        %v488 = vadd.f32 %v459, %v487
        %489 = vmatmul.f32.gmra.mxu0 %v317
        %v490 = vpop.f32.mrf.mxu0
        %v491 = vadd.f32 %v459, %v490
        %492 = vmatmul.f32.gmra.mxu0 %v319
        %v493 = vpop.f32.mrf.mxu0
        %v494 = vadd.f32 %v459, %v493
        %495 = vmatmul.f32.gmra.mxu0 %v321
        %v496 = vpop.f32.mrf.mxu0
        %v497 = vadd.f32 %v459, %v496
        %498 = vmatmul.f32.gmra.mxu0 %v323
        %v499 = vpop.f32.mrf.mxu0
        %v500 = vadd.f32 %v459, %v499
        %501 = vmatmul.f32.gmra.mxu0 %v325
        %v502 = vpop.f32.mrf.mxu0
        %v503 = vadd.f32 %v459, %v502
        %504 = vmatmul.f32.gmra.mxu0 %v327
        %v505 = vpop.f32.mrf.mxu0
        %v506 = vadd.f32 %v459, %v505
        %507 = vdwg.mxu0
        %508 = vmatpush.msra.mxu0 %v453
        %509 = vmatpush.msra.mxu0 %v449
        %510 = vmatpush.msra.mxu0 %v445
        %511 = vmatpush.msra.mxu0 %v441
        %512 = vmatpush.msra.mxu0 %v437
        %513 = vmatpush.msra.mxu0 %v433
        %514 = vmatpush.msra.mxu0 %v429
        %515 = vmatpush.msra.mxu0 %v425
        %516 = vmatpush.msra.mxu0 %v421
        %517 = vmatpush.msra.mxu0 %v417
        %518 = vmatpush.msra.mxu0 %v413
        %519 = vmatpush.msra.mxu0 %v409
        %520 = vmatpush.msra.mxu0 %v405
        %521 = vmatpush.msra.mxu0 %v401
        %522 = vmatpush.msra.mxu0 %v397
        %523 = vmatpush.msra.mxu0 %v393
        %524 = vmatmul.f32.gmra.mxu0 %v314
        %v525 = vpop.f32.mrf.mxu0
        %v526 = vadd.f32 %v485, %v525
        %527 = vmatmul.f32.gmra.mxu0 %v316
        %v528 = vpop.f32.mrf.mxu0
        %v529 = vadd.f32 %v488, %v528
        %530 = vmatmul.f32.gmra.mxu0 %v318
        %v531 = vpop.f32.mrf.mxu0
        %v532 = vadd.f32 %v491, %v531
        %533 = vmatmul.f32.gmra.mxu0 %v320
        %v534 = vpop.f32.mrf.mxu0
        %v535 = vadd.f32 %v494, %v534
        %536 = vmatmul.f32.gmra.mxu0 %v322
        %v537 = vpop.f32.mrf.mxu0
        %v538 = vadd.f32 %v497, %v537
        %539 = vmatmul.f32.gmra.mxu0 %v324
        %v540 = vpop.f32.mrf.mxu0
        %v541 = vadd.f32 %v500, %v540
        %542 = vmatmul.f32.gmra.mxu0 %v326
        %v543 = vpop.f32.mrf.mxu0
        %v544 = vadd.f32 %v503, %v543
        %545 = vmatmul.f32.gmra.mxu0 %v328
        %v546 = vpop.f32.mrf.mxu0
        %v547 = vadd.f32 %v506, %v546
        %548 = vdwg.mxu0
        %549 = vmatpush.msra.mxu0 %v390
        %550 = vmatpush.msra.mxu0 %v386
        %551 = vmatpush.msra.mxu0 %v382
        %552 = vmatpush.msra.mxu0 %v378
        %553 = vmatpush.msra.mxu0 %v374
        %554 = vmatpush.msra.mxu0 %v370
        %555 = vmatpush.msra.mxu0 %v366
        %556 = vmatpush.msra.mxu0 %v362
        %557 = vmatpush.msra.mxu0 %v358
        %558 = vmatpush.msra.mxu0 %v354
        %559 = vmatpush.msra.mxu0 %v350
        %560 = vmatpush.msra.mxu0 %v346
        %561 = vmatpush.msra.mxu0 %v342
        %562 = vmatpush.msra.mxu0 %v338
        %563 = vmatpush.msra.mxu0 %v334
        %564 = vmatpush.msra.mxu0 %v330
        %565 = vmatmul.f32.gmra.mxu0 %v313
        %v566 = vpop.f32.mrf.mxu0
        %v567 = vadd.f32 %v460, %v566
        %568 = vmatmul.f32.gmra.mxu0 %v315
        %v569 = vpop.f32.mrf.mxu0
        %v570 = vadd.f32 %v460, %v569
        %571 = vmatmul.f32.gmra.mxu0 %v317
        %v572 = vpop.f32.mrf.mxu0
        %v573 = vadd.f32 %v460, %v572
        %574 = vmatmul.f32.gmra.mxu0 %v319
        %v575 = vpop.f32.mrf.mxu0
        %v576 = vadd.f32 %v460, %v575
        %577 = vmatmul.f32.gmra.mxu0 %v321
        %v578 = vpop.f32.mrf.mxu0
        %v579 = vadd.f32 %v460, %v578
        %580 = vmatmul.f32.gmra.mxu0 %v323
        %v581 = vpop.f32.mrf.mxu0
        %v582 = vadd.f32 %v460, %v581
        %583 = vmatmul.f32.gmra.mxu0 %v325
        %v584 = vpop.f32.mrf.mxu0
        %v585 = vadd.f32 %v460, %v584
        %586 = vmatmul.f32.gmra.mxu0 %v327
        %v587 = vpop.f32.mrf.mxu0
        %v588 = vadd.f32 %v460, %v587
        %589 = vdwg.mxu0
        %590 = vmatpush.msra.mxu0 %v454
        %591 = vmatpush.msra.mxu0 %v450
        %592 = vmatpush.msra.mxu0 %v446
        %593 = vmatpush.msra.mxu0 %v442
        %594 = vmatpush.msra.mxu0 %v438
        %595 = vmatpush.msra.mxu0 %v434
        %596 = vmatpush.msra.mxu0 %v430
        %597 = vmatpush.msra.mxu0 %v426
        %598 = vmatpush.msra.mxu0 %v422
        %599 = vmatpush.msra.mxu0 %v418
        %600 = vmatpush.msra.mxu0 %v414
        %601 = vmatpush.msra.mxu0 %v410
        %602 = vmatpush.msra.mxu0 %v406
        %603 = vmatpush.msra.mxu0 %v402
        %604 = vmatpush.msra.mxu0 %v398
        %605 = vmatpush.msra.mxu0 %v394
        %606 = vmatmul.f32.gmra.mxu0 %v314
        %v607 = vpop.f32.mrf.mxu0
        %v608 = vadd.f32 %v567, %v607
        %609 = vmatmul.f32.gmra.mxu0 %v316
        %v610 = vpop.f32.mrf.mxu0
        %v611 = vadd.f32 %v570, %v610
        %612 = vmatmul.f32.gmra.mxu0 %v318
        %v613 = vpop.f32.mrf.mxu0
        %v614 = vadd.f32 %v573, %v613
        %615 = vmatmul.f32.gmra.mxu0 %v320
        %v616 = vpop.f32.mrf.mxu0
        %v617 = vadd.f32 %v576, %v616
        %618 = vmatmul.f32.gmra.mxu0 %v322
        %v619 = vpop.f32.mrf.mxu0
        %v620 = vadd.f32 %v579, %v619
        %621 = vmatmul.f32.gmra.mxu0 %v324
        %v622 = vpop.f32.mrf.mxu0
        %v623 = vadd.f32 %v582, %v622
        %624 = vmatmul.f32.gmra.mxu0 %v326
        %v625 = vpop.f32.mrf.mxu0
        %v626 = vadd.f32 %v585, %v625
        %627 = vmatmul.f32.gmra.mxu0 %v328
        %v628 = vpop.f32.mrf.mxu0
        %v629 = vadd.f32 %v588, %v628
        %630 = vdwg.mxu0
        %631 = vmatpush.msra.mxu0 %v391
        %632 = vmatpush.msra.mxu0 %v387
        %633 = vmatpush.msra.mxu0 %v383
        %634 = vmatpush.msra.mxu0 %v379
        %635 = vmatpush.msra.mxu0 %v375
        %636 = vmatpush.msra.mxu0 %v371
        %637 = vmatpush.msra.mxu0 %v367
        %638 = vmatpush.msra.mxu0 %v363
        %639 = vmatpush.msra.mxu0 %v359
        %640 = vmatpush.msra.mxu0 %v355
        %641 = vmatpush.msra.mxu0 %v351
        %642 = vmatpush.msra.mxu0 %v347
        %643 = vmatpush.msra.mxu0 %v343
        %644 = vmatpush.msra.mxu0 %v339
        %645 = vmatpush.msra.mxu0 %v335
        %646 = vmatpush.msra.mxu0 %v331
        %647 = vmatmul.f32.gmra.mxu0 %v313
        %v648 = vpop.f32.mrf.mxu0
        %v649 = vadd.f32 %v461, %v648
        %650 = vmatmul.f32.gmra.mxu0 %v315
        %v651 = vpop.f32.mrf.mxu0
        %v652 = vadd.f32 %v461, %v651
        %653 = vmatmul.f32.gmra.mxu0 %v317
        %v654 = vpop.f32.mrf.mxu0
        %v655 = vadd.f32 %v461, %v654
        %656 = vmatmul.f32.gmra.mxu0 %v319
        %v657 = vpop.f32.mrf.mxu0
        %v658 = vadd.f32 %v461, %v657
        %659 = vmatmul.f32.gmra.mxu0 %v321
        %v660 = vpop.f32.mrf.mxu0
        %v661 = vadd.f32 %v461, %v660
        %662 = vmatmul.f32.gmra.mxu0 %v323
        %v663 = vpop.f32.mrf.mxu0
        %v664 = vadd.f32 %v461, %v663
        %665 = vmatmul.f32.gmra.mxu0 %v325
        %v666 = vpop.f32.mrf.mxu0
        %v667 = vadd.f32 %v461, %v666
        %668 = vmatmul.f32.gmra.mxu0 %v327
        %v669 = vpop.f32.mrf.mxu0
        %v670 = vadd.f32 %v461, %v669
        %671 = vdwg.mxu0
        %672 = vmatpush.msra.mxu0 %v455
        %673 = vmatpush.msra.mxu0 %v451
        %674 = vmatpush.msra.mxu0 %v447
        %675 = vmatpush.msra.mxu0 %v443
        %676 = vmatpush.msra.mxu0 %v439
        %677 = vmatpush.msra.mxu0 %v435
        %678 = vmatpush.msra.mxu0 %v431
        %679 = vmatpush.msra.mxu0 %v427
        %680 = vmatpush.msra.mxu0 %v423
        %681 = vmatpush.msra.mxu0 %v419
        %682 = vmatpush.msra.mxu0 %v415
        %683 = vmatpush.msra.mxu0 %v411
        %684 = vmatpush.msra.mxu0 %v407
        %685 = vmatpush.msra.mxu0 %v403
        %686 = vmatpush.msra.mxu0 %v399
        %687 = vmatpush.msra.mxu0 %v395
        %688 = vmatmul.f32.gmra.mxu0 %v314
        %v689 = vpop.f32.mrf.mxu0
        %v690 = vadd.f32 %v649, %v689
        %691 = vmatmul.f32.gmra.mxu0 %v316
        %v692 = vpop.f32.mrf.mxu0
        %v693 = vadd.f32 %v652, %v692
        %694 = vmatmul.f32.gmra.mxu0 %v318
        %v695 = vpop.f32.mrf.mxu0
        %v696 = vadd.f32 %v655, %v695
        %697 = vmatmul.f32.gmra.mxu0 %v320
        %v698 = vpop.f32.mrf.mxu0
        %v699 = vadd.f32 %v658, %v698
        %700 = vmatmul.f32.gmra.mxu0 %v322
        %v701 = vpop.f32.mrf.mxu0
        %v702 = vadd.f32 %v661, %v701
        %703 = vmatmul.f32.gmra.mxu0 %v324
        %v704 = vpop.f32.mrf.mxu0
        %v705 = vadd.f32 %v664, %v704
        %706 = vmatmul.f32.gmra.mxu0 %v326
        %v707 = vpop.f32.mrf.mxu0
        %v708 = vadd.f32 %v667, %v707
        %709 = vmatmul.f32.gmra.mxu0 %v328
        %v710 = vpop.f32.mrf.mxu0
        %v711 = vadd.f32 %v670, %v710
        %712 = vdwg.mxu0
        %713 = vmatpush.msra.mxu0 %v392
        %714 = vmatpush.msra.mxu0 %v388
        %715 = vmatpush.msra.mxu0 %v384
        %716 = vmatpush.msra.mxu0 %v380
        %717 = vmatpush.msra.mxu0 %v376
        %718 = vmatpush.msra.mxu0 %v372
        %719 = vmatpush.msra.mxu0 %v368
        %720 = vmatpush.msra.mxu0 %v364
        %721 = vmatpush.msra.mxu0 %v360
        %722 = vmatpush.msra.mxu0 %v356
        %723 = vmatpush.msra.mxu0 %v352
        %724 = vmatpush.msra.mxu0 %v348
        %725 = vmatpush.msra.mxu0 %v344
        %726 = vmatpush.msra.mxu0 %v340
        %727 = vmatpush.msra.mxu0 %v336
        %728 = vmatpush.msra.mxu0 %v332
        %729 = vmatmul.f32.gmra.mxu0 %v313
        %v730 = vpop.f32.mrf.mxu0
        %v731 = vadd.f32 %v462, %v730
        %732 = vmatmul.f32.gmra.mxu0 %v315
        %v733 = vpop.f32.mrf.mxu0
        %v734 = vadd.f32 %v462, %v733
        %735 = vmatmul.f32.gmra.mxu0 %v317
        %v736 = vpop.f32.mrf.mxu0
        %v737 = vadd.f32 %v462, %v736
        %738 = vmatmul.f32.gmra.mxu0 %v319
        %v739 = vpop.f32.mrf.mxu0
        %v740 = vadd.f32 %v462, %v739
        %741 = vmatmul.f32.gmra.mxu0 %v321
        %v742 = vpop.f32.mrf.mxu0
        %v743 = vadd.f32 %v462, %v742
        %744 = vmatmul.f32.gmra.mxu0 %v323
        %v745 = vpop.f32.mrf.mxu0
        %v746 = vadd.f32 %v462, %v745
        %747 = vmatmul.f32.gmra.mxu0 %v325
        %v748 = vpop.f32.mrf.mxu0
        %v749 = vadd.f32 %v462, %v748
        %750 = vmatmul.f32.gmra.mxu0 %v327
        %v751 = vpop.f32.mrf.mxu0
        %v752 = vadd.f32 %v462, %v751
        %753 = vdwg.mxu0
        %754 = vmatpush.msra.mxu0 %v456
        %755 = vmatpush.msra.mxu0 %v452
        %756 = vmatpush.msra.mxu0 %v448
        %757 = vmatpush.msra.mxu0 %v444
        %758 = vmatpush.msra.mxu0 %v440
        %759 = vmatpush.msra.mxu0 %v436
        %760 = vmatpush.msra.mxu0 %v432
        %761 = vmatpush.msra.mxu0 %v428
        %762 = vmatpush.msra.mxu0 %v424
        %763 = vmatpush.msra.mxu0 %v420
        %764 = vmatpush.msra.mxu0 %v416
        %765 = vmatpush.msra.mxu0 %v412
        %766 = vmatpush.msra.mxu0 %v408
        %767 = vmatpush.msra.mxu0 %v404
        %768 = vmatpush.msra.mxu0 %v400
        %769 = vmatpush.msra.mxu0 %v396
        %770 = vmatmul.f32.gmra.mxu0 %v314
        %v771 = vpop.f32.mrf.mxu0
        %v772 = vadd.f32 %v731, %v771
        %773 = vmatmul.f32.gmra.mxu0 %v316
        %v774 = vpop.f32.mrf.mxu0
        %v775 = vadd.f32 %v734, %v774
        %776 = vmatmul.f32.gmra.mxu0 %v318
        %v777 = vpop.f32.mrf.mxu0
        %v778 = vadd.f32 %v737, %v777
        %779 = vmatmul.f32.gmra.mxu0 %v320
        %v780 = vpop.f32.mrf.mxu0
        %v781 = vadd.f32 %v740, %v780
        %782 = vmatmul.f32.gmra.mxu0 %v322
        %v783 = vpop.f32.mrf.mxu0
        %v784 = vadd.f32 %v743, %v783
        %785 = vmatmul.f32.gmra.mxu0 %v324
        %v786 = vpop.f32.mrf.mxu0
        %v787 = vadd.f32 %v746, %v786
        %788 = vmatmul.f32.gmra.mxu0 %v326
        %v789 = vpop.f32.mrf.mxu0
        %v790 = vadd.f32 %v749, %v789
        %791 = vmatmul.f32.gmra.mxu0 %v328
        %v792 = vpop.f32.mrf.mxu0
        %v793 = vadd.f32 %v752, %v792
        %794 = vdwg.mxu0
        %795 = vst [vmem:[#allocation2] sm:$0xff] %v526
        %796 = vst [vmem:[#allocation2 + $0x8] sm:$0xff] %v608
        %797 = vst [vmem:[#allocation2 + $0x10] sm:$0xff] %v690
        %798 = vst [vmem:[#allocation2 + $0x18] sm:$0xff] %v772
        %799 = vst [vmem:[#allocation2 + $0x20] sm:$0xff] %v529
        %800 = vst [vmem:[#allocation2 + $0x28] sm:$0xff] %v611
        %801 = vst [vmem:[#allocation2 + $0x30] sm:$0xff] %v693
        %802 = vst [vmem:[#allocation2 + $0x38] sm:$0xff] %v775
        %803 = vst [vmem:[#allocation2 + $0x40] sm:$0xff] %v532
        %804 = vst [vmem:[#allocation2 + $0x48] sm:$0xff] %v614
        %805 = vst [vmem:[#allocation2 + $0x50] sm:$0xff] %v696
        %806 = vst [vmem:[#allocation2 + $0x58] sm:$0xff] %v778
        %807 = vst [vmem:[#allocation2 + $0x60] sm:$0xff] %v535
        %808 = vst [vmem:[#allocation2 + $0x68] sm:$0xff] %v617
        %809 = vst [vmem:[#allocation2 + $0x70] sm:$0xff] %v699
        %810 = vst [vmem:[#allocation2 + $0x78] sm:$0xff] %v781
        %811 = vst [vmem:[#allocation2 + $0x80] sm:$0xff] %v538
        %812 = vst [vmem:[#allocation2 + $0x88] sm:$0xff] %v620
        %813 = vst [vmem:[#allocation2 + $0x90] sm:$0xff] %v702
        %814 = vst [vmem:[#allocation2 + $0x98] sm:$0xff] %v784
        %815 = vst [vmem:[#allocation2 + $0xa0] sm:$0xff] %v541
        %816 = vst [vmem:[#allocation2 + $0xa8] sm:$0xff] %v623
        %817 = vst [vmem:[#allocation2 + $0xb0] sm:$0xff] %v705
        %818 = vst [vmem:[#allocation2 + $0xb8] sm:$0xff] %v787
        %819 = vst [vmem:[#allocation2 + $0xc0] sm:$0xff] %v544
        %820 = vst [vmem:[#allocation2 + $0xc8] sm:$0xff] %v626
        %821 = vst [vmem:[#allocation2 + $0xd0] sm:$0xff] %v708
        %822 = vst [vmem:[#allocation2 + $0xd8] sm:$0xff] %v790
        %823 = vst [vmem:[#allocation2 + $0xe0] sm:$0xff] %v547
        %824 = vst [vmem:[#allocation2 + $0xe8] sm:$0xff] %v629
        %825 = vst [vmem:[#allocation2 + $0xf0] sm:$0xff] %v711
        %826 = vst [vmem:[#allocation2 + $0xf8] sm:$0xff] %v793
        %827 = vst [vmem:[#allocation3] sm:$0xff] 0.0
        %828 = vst [vmem:[#allocation4] sm:$0xff] 0.0
        loop: start=0, step=1, limit=8
        $region53: #{tpu_custom_call.1} parent=35 // loop_pre_header
          _
        $region54: #{tpu_custom_call.1} parent=35 // loop_header
          %s830 = sphi 0, %s834
          %p831 = scmp.ge.s32.totalorder %s830, 8
        $region55: #{tpu_custom_call.1} parent=35 // loop_header_branch
          %833 = sbr.rel (%p831) target = $region59
        $region56: #{tpu_custom_call.1} parent=35 // loop_body
          %p835 = scmp.eq.s32.totalorder %s25, 0
          %s836 = ssub.s32 7, %s830
          %s837 = scalar_select %p835, %s830, %s836
          %s838 = smul.u32 %s837, 8
          %s839 = sshra.s32 %s838, 3
          %s840 = sand.u32 %s838, 7
          %s841 = smul.u32 %s839, 4
          %s842 = smul.addr %s841, 8
          %s843 = scalar_lea.vmem [#allocation2], %s842
          %v844 = vld [vmem:[%s843] sm:$0xff]
          %v845 = vld [vmem:[%s843 + $0x8] sm:$0xff]
          %v846 = vld [vmem:[%s843 + $0x10] sm:$0xff]
          %v847 = vld [vmem:[%s843 + $0x18] sm:$0xff]
          %v848 = vld [vmem:[#allocation3] sm:$0xff]
          %v849 = vld [vmem:[%s267] sm:$0xff]
          %v850 = vld [vmem:[%s267 + $0x8] sm:$0xff]
          %v851 = vld [vmem:[%s267 + $0x10] sm:$0xff]
          %v852 = vld [vmem:[%s267 + $0x18] sm:$0xff]
          %v853 = vld [vmem:[%s267 + $0x20] sm:$0xff]
          %v854 = vld [vmem:[%s267 + $0x28] sm:$0xff]
          %v855 = vld [vmem:[%s267 + $0x30] sm:$0xff]
          %v856 = vld [vmem:[%s267 + $0x38] sm:$0xff]
          %v857 = vld [vmem:[%s267 + $0x40] sm:$0xff]
          %v858 = vld [vmem:[%s267 + $0x48] sm:$0xff]
          %v859 = vld [vmem:[%s267 + $0x50] sm:$0xff]
          %v860 = vld [vmem:[%s267 + $0x58] sm:$0xff]
          %v861 = vld [vmem:[%s267 + $0x60] sm:$0xff]
          %v862 = vld [vmem:[%s267 + $0x68] sm:$0xff]
          %v863 = vld [vmem:[%s267 + $0x70] sm:$0xff]
          %v864 = vld [vmem:[%s267 + $0x78] sm:$0xff]
          %v865 = vld [vmem:[%s267 + $0x80] sm:$0xff]
          %v866 = vld [vmem:[%s267 + $0x88] sm:$0xff]
          %v867 = vld [vmem:[%s267 + $0x90] sm:$0xff]
          %v868 = vld [vmem:[%s267 + $0x98] sm:$0xff]
          %v869 = vld [vmem:[%s267 + $0xa0] sm:$0xff]
          %v870 = vld [vmem:[%s267 + $0xa8] sm:$0xff]
          %v871 = vld [vmem:[%s267 + $0xb0] sm:$0xff]
          %v872 = vld [vmem:[%s267 + $0xb8] sm:$0xff]
          %v873 = vld [vmem:[%s267 + $0xc0] sm:$0xff]
          %v874 = vld [vmem:[%s267 + $0xc8] sm:$0xff]
          %v875 = vld [vmem:[%s267 + $0xd0] sm:$0xff]
          %v876 = vld [vmem:[%s267 + $0xd8] sm:$0xff]
          %v877 = vld [vmem:[%s267 + $0xe0] sm:$0xff]
          %v878 = vld [vmem:[%s267 + $0xe8] sm:$0xff]
          %v879 = vld [vmem:[%s267 + $0xf0] sm:$0xff]
          %v880 = vld [vmem:[%s267 + $0xf8] sm:$0xff]
          %v881 = vld [vmem:[%s267 + $0x100] sm:$0xff]
          %v882 = vld [vmem:[%s267 + $0x108] sm:$0xff]
          %v883 = vld [vmem:[%s267 + $0x110] sm:$0xff]
          %v884 = vld [vmem:[%s267 + $0x118] sm:$0xff]
          %v885 = vld [vmem:[%s267 + $0x120] sm:$0xff]
          %v886 = vld [vmem:[%s267 + $0x128] sm:$0xff]
          %v887 = vld [vmem:[%s267 + $0x130] sm:$0xff]
          %v888 = vld [vmem:[%s267 + $0x138] sm:$0xff]
          %v889 = vld [vmem:[%s267 + $0x140] sm:$0xff]
          %v890 = vld [vmem:[%s267 + $0x148] sm:$0xff]
          %v891 = vld [vmem:[%s267 + $0x150] sm:$0xff]
          %v892 = vld [vmem:[%s267 + $0x158] sm:$0xff]
          %v893 = vld [vmem:[%s267 + $0x160] sm:$0xff]
          %v894 = vld [vmem:[%s267 + $0x168] sm:$0xff]
          %v895 = vld [vmem:[%s267 + $0x170] sm:$0xff]
          %v896 = vld [vmem:[%s267 + $0x178] sm:$0xff]
          %v897 = vld [vmem:[%s267 + $0x180] sm:$0xff]
          %v898 = vld [vmem:[%s267 + $0x188] sm:$0xff]
          %v899 = vld [vmem:[%s267 + $0x190] sm:$0xff]
          %v900 = vld [vmem:[%s267 + $0x198] sm:$0xff]
          %v901 = vld [vmem:[%s267 + $0x1a0] sm:$0xff]
          %v902 = vld [vmem:[%s267 + $0x1a8] sm:$0xff]
          %v903 = vld [vmem:[%s267 + $0x1b0] sm:$0xff]
          %v904 = vld [vmem:[%s267 + $0x1b8] sm:$0xff]
          %v905 = vld [vmem:[%s267 + $0x1c0] sm:$0xff]
          %v906 = vld [vmem:[%s267 + $0x1c8] sm:$0xff]
          %v907 = vld [vmem:[%s267 + $0x1d0] sm:$0xff]
          %v908 = vld [vmem:[%s267 + $0x1d8] sm:$0xff]
          %v909 = vld [vmem:[%s267 + $0x1e0] sm:$0xff]
          %v910 = vld [vmem:[%s267 + $0x1e8] sm:$0xff]
          %v911 = vld [vmem:[%s267 + $0x1f0] sm:$0xff]
          %v912 = vld [vmem:[%s267 + $0x1f8] sm:$0xff]
          %913 = vmatpush.msra.mxu0 %v909
          %914 = vmatpush.msra.mxu0 %v905
          %915 = vmatpush.msra.mxu0 %v901
          %916 = vmatpush.msra.mxu0 %v897
          %917 = vmatpush.msra.mxu0 %v893
          %918 = vmatpush.msra.mxu0 %v889
          %919 = vmatpush.msra.mxu0 %v885
          %920 = vmatpush.msra.mxu0 %v881
          %921 = vmatpush.msra.mxu0 %v877
          %922 = vmatpush.msra.mxu0 %v873
          %923 = vmatpush.msra.mxu0 %v869
          %924 = vmatpush.msra.mxu0 %v865
          %925 = vmatpush.msra.mxu0 %v861
          %926 = vmatpush.msra.mxu0 %v857
          %927 = vmatpush.msra.mxu0 %v853
          %928 = vmatpush.msra.mxu0 %v849
          %929 = vmatmul.f32.gmra.mxu0 %v848
          %v930 = vpop.f32.mrf.mxu0
          %v931 = vadd.f32 0.0, %v930
          %932 = vdwg.mxu0
          %933 = vmatpush.msra.mxu0 %v910
          %934 = vmatpush.msra.mxu0 %v906
          %935 = vmatpush.msra.mxu0 %v902
          %936 = vmatpush.msra.mxu0 %v898
          %937 = vmatpush.msra.mxu0 %v894
          %938 = vmatpush.msra.mxu0 %v890
          %939 = vmatpush.msra.mxu0 %v886
          %940 = vmatpush.msra.mxu0 %v882
          %941 = vmatpush.msra.mxu0 %v878
          %942 = vmatpush.msra.mxu0 %v874
          %943 = vmatpush.msra.mxu0 %v870
          %944 = vmatpush.msra.mxu0 %v866
          %945 = vmatpush.msra.mxu0 %v862
          %946 = vmatpush.msra.mxu0 %v858
          %947 = vmatpush.msra.mxu0 %v854
          %948 = vmatpush.msra.mxu0 %v850
          %949 = vmatmul.f32.gmra.mxu0 %v848
          %v950 = vpop.f32.mrf.mxu0
          %v951 = vadd.f32 0.0, %v950
          %952 = vdwg.mxu0
          %953 = vmatpush.msra.mxu0 %v911
          %954 = vmatpush.msra.mxu0 %v907
          %955 = vmatpush.msra.mxu0 %v903
          %956 = vmatpush.msra.mxu0 %v899
          %957 = vmatpush.msra.mxu0 %v895
          %958 = vmatpush.msra.mxu0 %v891
          %959 = vmatpush.msra.mxu0 %v887
          %960 = vmatpush.msra.mxu0 %v883
          %961 = vmatpush.msra.mxu0 %v879
          %962 = vmatpush.msra.mxu0 %v875
          %963 = vmatpush.msra.mxu0 %v871
          %964 = vmatpush.msra.mxu0 %v867
          %965 = vmatpush.msra.mxu0 %v863
          %966 = vmatpush.msra.mxu0 %v859
          %967 = vmatpush.msra.mxu0 %v855
          %968 = vmatpush.msra.mxu0 %v851
          %969 = vmatmul.f32.gmra.mxu0 %v848
          %v970 = vpop.f32.mrf.mxu0
          %v971 = vadd.f32 0.0, %v970
          %972 = vdwg.mxu0
          %973 = vmatpush.msra.mxu0 %v912
          %974 = vmatpush.msra.mxu0 %v908
          %975 = vmatpush.msra.mxu0 %v904
          %976 = vmatpush.msra.mxu0 %v900
          %977 = vmatpush.msra.mxu0 %v896
          %978 = vmatpush.msra.mxu0 %v892
          %979 = vmatpush.msra.mxu0 %v888
          %980 = vmatpush.msra.mxu0 %v884
          %981 = vmatpush.msra.mxu0 %v880
          %982 = vmatpush.msra.mxu0 %v876
          %983 = vmatpush.msra.mxu0 %v872
          %984 = vmatpush.msra.mxu0 %v868
          %985 = vmatpush.msra.mxu0 %v864
          %986 = vmatpush.msra.mxu0 %v860
          %987 = vmatpush.msra.mxu0 %v856
          %988 = vmatpush.msra.mxu0 %v852
          %989 = vmatmul.f32.gmra.mxu0 %v848
          %v990 = vpop.f32.mrf.mxu0
          %v991 = vadd.f32 0.0, %v990
          %992 = vdwg.mxu0
          %v993 = vadd.f32 %v844, %v931
          %v994 = vadd.f32 %v845, %v951
          %v995 = vadd.f32 %v846, %v971
          %v996 = vadd.f32 %v847, %v991
          %v997 = vxor.u32 %v993, 2147483648
          %v998 = vmul.f32 %v997, 1.442695
          %v999 = vpow.pop %v998
          %v1000 = vadd.f32 %v999, 1.0
          %v1001 = vrcp.pop %v1000
          %v1002 = vmul.f32 %v1000, %v1001
          %v1003 = vsub.f32 1.0, %v1002
          %v1004 = vmul.f32 %v1001, %v1003
          %v1005 = vadd.f32 %v1001, %v1004
          %vm1006 = vweird.f32 %v1000
          %vm1007 = vweird.f32 %v1001
          %vm1008 = vmor %vm1006, %vm1007
          %v1009 = vsel %vm1008, %v1001, %v1005
          %v1010 = vand.u32 2147483647, %v1000
          %vm1011 = vcmp.eq.f32.partialorder %v1010, 8.507059e+37
          %v1012 = vand.u32 %v1000, 2147483648
          %v1013 = vor.u32 1.1754944e-38, %v1012
          %v1014 = vsel %vm1011, %v1013, %v1009
          %v1015 = vmul.f32 1.0, %v1014
          %v1016 = vxor.u32 %v994, 2147483648
          %v1017 = vmul.f32 %v1016, 1.442695
          %v1018 = vpow.pop %v1017
          %v1019 = vadd.f32 %v1018, 1.0
          %v1020 = vrcp.pop %v1019
          %v1021 = vmul.f32 %v1019, %v1020
          %v1022 = vsub.f32 1.0, %v1021
          %v1023 = vmul.f32 %v1020, %v1022
          %v1024 = vadd.f32 %v1020, %v1023
          %vm1025 = vweird.f32 %v1019
          %vm1026 = vweird.f32 %v1020
          %vm1027 = vmor %vm1025, %vm1026
          %v1028 = vsel %vm1027, %v1020, %v1024
          %v1029 = vand.u32 2147483647, %v1019
          %vm1030 = vcmp.eq.f32.partialorder %v1029, 8.507059e+37
          %v1031 = vand.u32 %v1019, 2147483648
          %v1032 = vor.u32 1.1754944e-38, %v1031
          %v1033 = vsel %vm1030, %v1032, %v1028
          %v1034 = vmul.f32 1.0, %v1033
          %v1035 = vtanh.pop %v995
          %v1036 = vxor.u32 %v996, 2147483648
          %v1037 = vmul.f32 %v1036, 1.442695
          %v1038 = vpow.pop %v1037
          %v1039 = vadd.f32 %v1038, 1.0
          %v1040 = vrcp.pop %v1039
          %v1041 = vmul.f32 %v1039, %v1040
          %v1042 = vsub.f32 1.0, %v1041
          %v1043 = vmul.f32 %v1040, %v1042
          %v1044 = vadd.f32 %v1040, %v1043
          %vm1045 = vweird.f32 %v1039
          %vm1046 = vweird.f32 %v1040
          %vm1047 = vmor %vm1045, %vm1046
          %v1048 = vsel %vm1047, %v1040, %v1044
          %v1049 = vand.u32 2147483647, %v1039
          %vm1050 = vcmp.eq.f32.partialorder %v1049, 8.507059e+37
          %v1051 = vand.u32 %v1039, 2147483648
          %v1052 = vor.u32 1.1754944e-38, %v1051
          %v1053 = vsel %vm1050, %v1052, %v1048
          %v1054 = vmul.f32 1.0, %v1053
          %v1055 = vld [vmem:[#allocation4] sm:$0xff]
          %v1056 = vmul.f32 %v1034, %v1055
          %v1057 = vmul.f32 %v1015, %v1035
          %v1058 = vadd.f32 %v1056, %v1057
          %v1059 = vtanh.pop %v1058
          %v1060 = vmul.f32 %v1054, %v1059
          %1061 = vst [vmem:[#allocation4] sm:$0xff] %v1058
          %1062 = vst [vmem:[#allocation3] sm:$0xff] %v1060
          %s1063 = scalar_lea.vmem %s312, %s838 [#allocation13]
          %1064 = vst [vmem:[%s1063] sm:$0xff] %v1060
        $region57: #{tpu_custom_call.1} parent=35 // loop_footer
          %s834 = sadd.s32 1, %s830
        $region58: #{tpu_custom_call.1} parent=35 // loop_footer_branch
          %829 = sbr.rel target = $region54
        $region59: #{tpu_custom_call.1} parent=35 // loop_exit
          _
        %s1065 = sand.u32 %s132, 1
        %s1066 = scalar_lea.sflag [#allocation7], %s1065
        %s1067 = sand.u32 %s132, 1
        %s1068 = smul.addr %s1067, 64
        %s1069 = scalar_lea.vmem [#allocation13], %s1068
        // Predicated region
        $region60: #{tpu_custom_call.1} parent=35 // pred_check
          %p1070 = pneg %p142
        $region61: #{tpu_custom_call.1} parent=35 // pred_check_branch
          %1072 = sbr.rel (%p1070) target = $region63
        $region62: #{tpu_custom_call.1} parent=35 // pred_region
          %1074 = vsyncadd %s1066, 0
          %s1075 = smul.addr %s25, 8
          %s1076 = scalar_lea.hbm %s4, %s1075
          %s1077 = sshll.u32 %s1069, 4
          %s1078 = int_to_ptr.vmem [resolvable:$true] %s1077
          %s1079 = sshll.u32 %s1076, 4
          %s1080 = int_to_ptr.hbm [resolvable:$true] %s1079
          %1085 = dma.vmem_to_hbm [thread:$0]  %s1078, 1024, %s1080, %s1066, 128, 256, 8
        $region63: #{tpu_custom_call.1} parent=35 // pred_fallthru
          _
      $region36: #{tpu_custom_call.1} parent=5 // pred_fallthru
        _
      %p1086 = scmp.le.s32.totalorder 2, %s20
      // Predicated region
      $region64: #{tpu_custom_call.1} parent=5 // pred_check
        %p1087 = pneg %p1086
      $region65: #{tpu_custom_call.1} parent=5 // pred_check_branch
        %1089 = sbr.rel (%p1087) target = $region67
      $region66: #{tpu_custom_call.1} parent=5 // pred_region
        %s1090 = ssub.s32 %s20, 2
        // Predicated region
        $region68: #{tpu_custom_call.1} parent=66 // pred_check
          %p1091 = pneg %p148
        $region69: #{tpu_custom_call.1} parent=66 // pred_check_branch
          %1093 = sbr.rel (%p1091) target = $region71
        $region70: #{tpu_custom_call.1} parent=66 // pred_region
          %s1094 = sand.u32 %s133, 1
          %s1095 = scalar_lea.sflag [#allocation7], %s1094
          %s1096 = sand.u32 %s133, 1
          %s1097 = smul.addr %s1096, 64
          %s1098 = scalar_lea.vmem [#allocation13], %s1097
          %1100 = dma.done %s1095, 1024
        $region71: #{tpu_custom_call.1} parent=66 // pred_fallthru
          _
      $region67: #{tpu_custom_call.1} parent=5 // pred_fallthru
        _
    $region6: #{tpu_custom_call.1} parent=1 // loop_footer
      %s24 = sadd.s32 1, %s20
    $region7: #{tpu_custom_call.1} parent=1 // loop_footer_branch
      %19 = sbr.rel target = $region3
    $region8: #{tpu_custom_call.1} parent=1 // loop_exit
      _
    %1101 = vsyncpa [#allocation6], 1
    %s1102 = scalar_lea.sflag [#allocation6], 1
    %1103 = vsyncpa %s1102, 1
    %1104 = vsyncpa [#allocation9], 1
    %s1105 = scalar_lea.sflag [#allocation9], 1
    %1106 = vsyncpa %s1105, 1
    %1107 = vsyncpa [#allocation12], 1
    %s1108 = scalar_lea.sflag [#allocation12], 1
    %1109 = vsyncpa %s1108, 1
    %1110 = vsyncpa [#allocation7], 1
    %s1111 = scalar_lea.sflag [#allocation7], 1
    %1112 = vsyncpa %s1111, 1

</llo_original>
